<compile_context>
chip_gen: v5e
topology: v5e:2x2
jax: 0.10.0
libtpu: 0.0.40
codegen_flags: <defaults>
</compile_context>

<pallas_src>
import functools

import jax
import jax.numpy as jnp
from jax.experimental import pallas as pl
from jax.experimental.pallas import tpu as pltpu

_TM_TARGET = 512                     # row tile (arithmetic-intensity lever)
_TN_TARGET = 512                     # lane-dense output tile (multiple of 128)
_VMEM_BUDGET = 40 * 1024 * 1024      # working-set target (fits all generations)
_VMEM_LIMIT = 48 * 1024 * 1024       # scoped VMEM limit passed to Mosaic


def _round_up(a, b):
    return ((a + b - 1) // b) * b


# ---------------------------------------------------------------------------
# Exact GELU (erf form) from Mosaic-friendly primitives
# ---------------------------------------------------------------------------
def _erf_approx(x, fast_recip):
    # Abramowitz & Stegun 7.1.26, max abs error ~1.5e-7 (effectively exact in f32)
    a1, a2, a3, a4, a5 = (0.254829592, -0.284496736, 1.421413741,
                          -1.453152027, 1.061405429)
    p = 0.3275911
    ax = jnp.abs(x)
    # EUP reciprocal frees VALU slots in the epilogue; exact on the f32 path.
    t = pl.reciprocal(1.0 + p * ax, approx=fast_recip)
    poly = ((((a5 * t + a4) * t + a3) * t + a2) * t + a1) * t
    y = 1.0 - poly * jnp.exp(-ax * ax)
    return jnp.where(x >= 0, y, -y)


def _gelu_exact(x, fast_recip):
    # 0.5 * x * (1 + erf(x / sqrt(2)))  -- matches torch nn.GELU() (exact form)
    return 0.5 * x * (1.0 + _erf_approx(x * 0.7071067811865476, fast_recip))


# ---------------------------------------------------------------------------
# Linear kernels:  y = act(x @ W + b)    (W already stored as (K, Nout))
# ---------------------------------------------------------------------------
def _linear_kernel_fullk(x_ref, w_ref, b_ref, o_ref, *, activation, fast_recip):
    """Single-pass reduction (tk == K): no accumulator scratch, 2-D grid."""
    x = x_ref[...]
    if x.dtype != w_ref.dtype:           # static; normally a no-op (pre-cast)
        x = x.astype(w_ref.dtype)
    y = jnp.dot(x, w_ref[...], preferred_element_type=jnp.float32)
    y = y + b_ref[...].astype(jnp.float32)
    if activation == "gelu":
        y = _gelu_exact(y, fast_recip)
    o_ref[...] = y.astype(o_ref.dtype)


def _linear_kernel_acc(x_ref, w_ref, b_ref, o_ref, acc_ref, *, activation,
                       fast_recip):
    """Multi-step reduction over the k grid axis with an f32 VMEM accumulator."""
    k = pl.program_id(2)

    @pl.when(k == 0)
    def _init():
        acc_ref[...] = jnp.zeros_like(acc_ref)

    x = x_ref[...]
    if x.dtype != w_ref.dtype:
        x = x.astype(w_ref.dtype)
    acc_ref[...] += jnp.dot(x, w_ref[...], preferred_element_type=jnp.float32)

    @pl.when(k == pl.num_programs(2) - 1)
    def _finalize():
        y = acc_ref[...] + b_ref[...].astype(jnp.float32)
        if activation == "gelu":
            y = _gelu_exact(y, fast_recip)
        o_ref[...] = y.astype(o_ref.dtype)


# ---------------------------------------------------------------------------
# Tiling helpers
# ---------------------------------------------------------------------------
def _pick_divisor_tile(dim, target, align):
    """Largest t <= target with dim % t == 0 and t % align == 0.  Model dims
    (C, 4C) are multiples of 128 in practice; full-dim fallback only fires for
    odd configs and is always a legal block shape."""
    if dim <= target:
        return dim
    t = (target // align) * align
    while t >= align:
        if dim % t == 0:
            return t
        t -= align
    return dim


def linear(x2d, w, b, *, activation=None, out_dtype=None, tm=None):
    """y = act(x2d @ w + b).  x2d: (M, K); w: (K, Nout) pre-transposed (and
    pre-cast); b: (1, Nout) f32.  Rows are padded to a multiple of the row
    tile and sliced off on return."""
    M, K = x2d.shape
    Kw, Nout = w.shape
    assert K == Kw, (K, Kw)
    out_dtype = out_dtype if out_dtype is not None else x2d.dtype

    x_bytes = jnp.dtype(x2d.dtype).itemsize
    w_bytes = jnp.dtype(w.dtype).itemsize
    o_bytes = jnp.dtype(out_dtype).itemsize

    # --- row tile + padding (never fall back to a full-M block) ------------
    if tm is None:
        m_align = 16 if (jnp.dtype(out_dtype).itemsize < 4 or x_bytes < 4) else 8
        tm = min(_TM_TARGET, _round_up(M, m_align))
    pad_rows = _round_up(M, tm) - M
    if pad_rows:
        x2d = jnp.pad(x2d, ((0, pad_rows), (0, 0)))
    Mp = M + pad_rows

    # --- lane-dense output tile --------------------------------------------
    tn = _pick_divisor_tile(Nout, _TN_TARGET, 128)

    # --- reduction tile: full K if the double-buffered working set fits -----
    def vmem_bytes(tk_, multi_k):
        est = 2 * (tm * tk_ * x_bytes + tk_ * tn * w_bytes + tn * 4
                   + tm * tn * o_bytes)
        if multi_k:
            est += tm * tn * 4           # f32 accumulator (single-buffered)
        return est

    if vmem_bytes(K, False) <= _VMEM_BUDGET:
        tk = K
    else:
        cands = [d for d in range(128, K, 128) if K % d == 0]
        tk = None
        for d in sorted(cands, reverse=True):
            if vmem_bytes(d, True) <= _VMEM_BUDGET:
                tk = d
                break
        if tk is None:
            tk = cands[0] if cands else K

    fast_recip = (jnp.dtype(w.dtype) == jnp.dtype(jnp.bfloat16))

    if tk == K:
        # 2-D grid: no accumulator scratch, no per-k grid overhead.
        kernel = functools.partial(_linear_kernel_fullk, activation=activation,
                                   fast_recip=fast_recip)
        grid_spec = pltpu.PrefetchScalarGridSpec(
            num_scalar_prefetch=0,
            grid=(Mp // tm, Nout // tn),
            in_specs=[
                pl.BlockSpec((tm, K), lambda i, j: (i, 0)),    # x row-slab
                pl.BlockSpec((K, tn), lambda i, j: (0, j)),    # W column tile
                pl.BlockSpec((1, tn), lambda i, j: (0, j)),    # bias tile
            ],
            out_specs=pl.BlockSpec((tm, tn), lambda i, j: (i, j)),
        )
        dims = ("parallel", "parallel")
    else:
        kernel = functools.partial(_linear_kernel_acc, activation=activation,
                                   fast_recip=fast_recip)
        grid_spec = pltpu.PrefetchScalarGridSpec(
            num_scalar_prefetch=0,
            grid=(Mp // tm, Nout // tn, K // tk),
            in_specs=[
                pl.BlockSpec((tm, tk), lambda i, j, k: (i, k)),
                pl.BlockSpec((tk, tn), lambda i, j, k: (k, j)),
                pl.BlockSpec((1, tn), lambda i, j, k: (0, j)),
            ],
            out_specs=pl.BlockSpec((tm, tn), lambda i, j, k: (i, j)),
            scratch_shapes=[pltpu.VMEM((tm, tn), jnp.float32)],
        )
        dims = ("parallel", "parallel", "arbitrary")

    y = pl.pallas_call(
        kernel,
        out_shape=jax.ShapeDtypeStruct((Mp, Nout), out_dtype),
        grid_spec=grid_spec,
        compiler_params=pltpu.CompilerParams(
            dimension_semantics=dims,
            vmem_limit_bytes=_VMEM_LIMIT),
    )(x2d, w, b)

    return y[:M] if pad_rows else y


# ---------------------------------------------------------------------------
# Mlp:  fc2(GELU(fc1(x)))
# ---------------------------------------------------------------------------
def prepare_params(fc1_w, fc1_b, fc2_w, fc2_b, *, compute_dtype=jnp.bfloat16):
    """torch nn.Linear weights are (out_features, in_features); transpose AND
    cast to the MXU compute dtype ONCE here (compute_dtype=None keeps f32).
    Biases stay f32 — they are added to the f32 accumulator in the epilogue."""
    wd = compute_dtype if compute_dtype is not None else jnp.asarray(fc1_w).dtype
    return {
        "w1": jnp.asarray(fc1_w).T.astype(wd),                  # (C, H)
        "b1": jnp.asarray(fc1_b).reshape(1, -1).astype(jnp.float32),
        "w2": jnp.asarray(fc2_w).T.astype(wd),                  # (H, C)
        "b2": jnp.asarray(fc2_b).reshape(1, -1).astype(jnp.float32),
    }


def mlp_forward(x, params):
    """x: (..., C).  bf16 MXU path by default (weights pre-cast in params);
    accumulation is always f32; final output is in x.dtype."""
    lead_shape, C = x.shape[:-1], x.shape[-1]
    x2d = x.reshape(-1, C)
    wdt = jnp.dtype(params["w1"].dtype)
    if x2d.dtype != wdt:
        x2d = x2d.astype(wdt)            # cast activations once (not per tile)

    # Pad rows once for both matmuls (DINOv2 token counts M = B*257 are not
    # multiples of 8/16); padded rows are sliced off at the end.
    M = x2d.shape[0]
    m_align = 16 if (wdt.itemsize < 4 or jnp.dtype(x.dtype).itemsize < 4) else 8
    tm = min(_TM_TARGET, _round_up(M, m_align))
    M_pad = _round_up(M, tm)
    if M_pad != M:
        x2d = jnp.pad(x2d, ((0, M_pad - M), (0, 0)))

    # fc1 + exact GELU fused; intermediate emitted in the compute dtype.
    h = linear(x2d, params["w1"], params["b1"], activation="gelu",
               out_dtype=wdt, tm=tm)
    # fc2; output back in the input dtype.
    y = linear(h, params["w2"], params["b2"], activation=None,
               out_dtype=x.dtype, tm=tm)
    if M_pad != M:
        y = y[:M]
    return y.reshape(*lead_shape, C)


# ---------------------------------------------------------------------------
# Pure-JAX reference (exact GELU, matches torch nn.GELU default)
# ---------------------------------------------------------------------------
def mlp_reference(x, fc1_w, fc1_b, fc2_w, fc2_b):
    h = jax.nn.gelu(x @ fc1_w.T + fc1_b, approximate=False)
    return h @ fc2_w.T + fc2_b


if __name__ == "__main__":
    key = jax.random.PRNGKey(0)
    B, N, C, H = 2, 8, 32, 128   # small test shapes; production DINOv2: C>=384, H=4C

    k1, k2, k3, k4, k5 = jax.random.split(key, 5)
    x = jax.random.normal(k1, (B, N, C), dtype=jnp.float32)

    # torch nn.Linear layout: weight (out_features, in_features), bias (out_features,)
    fc1_w = jax.random.normal(k2, (H, C), dtype=jnp.float32) * 0.05
    fc2_w = jax.random.normal(k3, (C, H), dtype=jnp.float32) * 0.05
    fc1_b = jax.random.normal(k4, (H,), dtype=jnp.float32) * 0.01
    fc2_b = jax.random.normal(k5, (C,), dtype=jnp.float32) * 0.01

    ref = mlp_reference(x, fc1_w, fc1_b, fc2_w, fc2_b)

    # f32 path: tight check against the reference (exact reciprocal in GELU).
    params_f32 = prepare_params(fc1_w, fc1_b, fc2_w, fc2_b, compute_dtype=None)
    out_f32 = jax.block_until_ready(mlp_forward(x, params_f32))
    assert out_f32.shape == (B, N, C)
    assert jnp.allclose(out_f32, ref, atol=1e-4, rtol=1e-4), "f32 mismatch vs reference"

    # Default bf16-weight MXU path (f32 accumulation): looser tolerance
    # (bf16 weights + bf16 intermediate rounding + approx EUP reciprocal).
    params = prepare_params(fc1_w, fc1_b, fc2_w, fc2_b)     # bf16 by default
    out = jax.block_until_ready(mlp_forward(x, params))
    assert out.shape == (B, N, C)
    assert jnp.allclose(out.astype(jnp.float32), ref, atol=5e-2, rtol=5e-2), \
        "bf16 mismatch vs reference"

    # Non-divisible token count (exercises the row-padding path, like B*257).
    x2 = jax.random.normal(k1, (2, 257, C), dtype=jnp.float32)
    ref2 = mlp_reference(x2, fc1_w, fc1_b, fc2_w, fc2_b)
    out2 = jax.block_until_ready(mlp_forward(x2, params_f32))
    assert out2.shape == (2, 257, C)
    assert jnp.allclose(out2, ref2, atol=1e-4, rtol=1e-4), "padded-M mismatch vs reference"

    print("KERNEL_OK")
</pallas_src>

<mosaic_0001>
module attributes {stable_mosaic.version = 11 : i64} {
  func.func @_linear_kernel_fullk(%arg0: i32, %arg1: i32, %arg2: memref<16x32xf32, #tpu.memory_space<vmem>>, %arg3: memref<32x128xf32, #tpu.memory_space<vmem>>, %arg4: memref<1x128xf32, #tpu.memory_space<vmem>>, %arg5: memref<16x128xf32, #tpu.memory_space<vmem>>) attributes {dimension_semantics = [#tpu.dimension_semantics<parallel>, #tpu.dimension_semantics<parallel>], iteration_bounds = array<i64: 1, 1>, scalar_prefetch = 0 : i64, scratch_operands = 0 : i64, tpu.core_type = #tpu.core_type<tc>, window_params = [{transform_indices = @transform_0, window_bounds = array<i64: 16, 32>}, {transform_indices = @transform_1, window_bounds = array<i64: 32, 128>}, {transform_indices = @transform_2, window_bounds = array<i64: 1, 128>}, {transform_indices = @transform_3, window_bounds = array<i64: 16, 128>}]} {
    %c0 = arith.constant 0 : index
    %c0_0 = arith.constant 0 : index
    %0 = vector.load %arg2[%c0, %c0_0] : memref<16x32xf32, #tpu.memory_space<vmem>>, vector<16x32xf32>
    %c0_1 = arith.constant 0 : index
    %c0_2 = arith.constant 0 : index
    %1 = vector.load %arg3[%c0_1, %c0_2] : memref<32x128xf32, #tpu.memory_space<vmem>>, vector<32x128xf32>
    %cst = arith.constant dense<0.000000e+00> : vector<16x128xf32>
    %2 = tpu.matmul %0, %1, %cst {dimension_numbers = #tpu.dot_dimension_numbers<[1], [0], [0], [1], [0, 0, 1, 1], [], []>} : vector<16x32xf32>, vector<32x128xf32>, vector<16x128xf32> -> vector<16x128xf32>
    %c0_3 = arith.constant 0 : index
    %c0_4 = arith.constant 0 : index
    %3 = vector.load %arg4[%c0_3, %c0_4] : memref<1x128xf32, #tpu.memory_space<vmem>>, vector<1x128xf32>
    %4 = vector.broadcast %3 : vector<1x128xf32> to vector<16x128xf32>
    %5 = arith.addf %2, %4 : vector<16x128xf32>
    %cst_5 = arith.constant 5.000000e-01 : f32
    %6 = vector.broadcast %cst_5 : f32 to vector<16x128xf32>
    %7 = arith.mulf %6, %5 : vector<16x128xf32>
    %cst_6 = arith.constant 0.707106769 : f32
    %8 = vector.broadcast %cst_6 : f32 to vector<16x128xf32>
    %9 = arith.mulf %5, %8 : vector<16x128xf32>
    %10 = math.absf %9 : vector<16x128xf32>
    %cst_7 = arith.constant 0.327591091 : f32
    %11 = vector.broadcast %cst_7 : f32 to vector<16x128xf32>
    %12 = arith.mulf %11, %10 : vector<16x128xf32>
    %cst_8 = arith.constant 1.000000e+00 : f32
    %13 = vector.broadcast %cst_8 : f32 to vector<16x128xf32>
    %14 = arith.addf %13, %12 : vector<16x128xf32>
    %15 = tpu.reciprocal %14 : vector<16x128xf32> -> vector<16x128xf32>
    %cst_9 = arith.constant 1.06140542 : f32
    %16 = vector.broadcast %cst_9 : f32 to vector<16x128xf32>
    %17 = arith.mulf %16, %15 : vector<16x128xf32>
    %cst_10 = arith.constant -1.45315206 : f32
    %18 = vector.broadcast %cst_10 : f32 to vector<16x128xf32>
    %19 = arith.addf %17, %18 : vector<16x128xf32>
    %20 = arith.mulf %19, %15 : vector<16x128xf32>
    %cst_11 = arith.constant 1.42141378 : f32
    %21 = vector.broadcast %cst_11 : f32 to vector<16x128xf32>
    %22 = arith.addf %20, %21 : vector<16x128xf32>
    %23 = arith.mulf %22, %15 : vector<16x128xf32>
    %cst_12 = arith.constant -0.284496725 : f32
    %24 = vector.broadcast %cst_12 : f32 to vector<16x128xf32>
    %25 = arith.addf %23, %24 : vector<16x128xf32>
    %26 = arith.mulf %25, %15 : vector<16x128xf32>
    %cst_13 = arith.constant 0.254829586 : f32
    %27 = vector.broadcast %cst_13 : f32 to vector<16x128xf32>
    %28 = arith.addf %26, %27 : vector<16x128xf32>
    %29 = arith.mulf %28, %15 : vector<16x128xf32>
    %cst_14 = arith.constant 0.000000e+00 : f32
    %30 = vector.broadcast %cst_14 : f32 to vector<16x128xf32>
    %31 = arith.subf %30, %10 : vector<16x128xf32>
    %32 = arith.mulf %31, %10 : vector<16x128xf32>
    %33 = math.exp %32 : vector<16x128xf32>
    %34 = arith.mulf %29, %33 : vector<16x128xf32>
    %cst_15 = arith.constant 1.000000e+00 : f32
    %35 = vector.broadcast %cst_15 : f32 to vector<16x128xf32>
    %36 = arith.subf %35, %34 : vector<16x128xf32>
    %cst_16 = arith.constant 0.000000e+00 : f32
    %37 = vector.broadcast %cst_16 : f32 to vector<16x128xf32>
    %38 = arith.cmpf oge, %9, %37 : vector<16x128xf32>
    %cst_17 = arith.constant 0.000000e+00 : f32
    %39 = vector.broadcast %cst_17 : f32 to vector<16x128xf32>
    %40 = arith.subf %39, %36 : vector<16x128xf32>
    %41 = arith.select %38, %36, %40 : vector<16x128xi1>, vector<16x128xf32>
    %cst_18 = arith.constant 1.000000e+00 : f32
    %42 = vector.broadcast %cst_18 : f32 to vector<16x128xf32>
    %43 = arith.addf %42, %41 : vector<16x128xf32>
    %44 = arith.mulf %7, %43 : vector<16x128xf32>
    %c0_19 = arith.constant 0 : index
    %c0_20 = arith.constant 0 : index
    %45 = vector.load %arg5[%c0_19, %c0_20] : memref<16x128xf32, #tpu.memory_space<vmem>>, vector<16x128xf32>
    tpu.vector_store %arg5[%c0_19, %c0_20], %44 {strides = array<i32>} : memref<16x128xf32, #tpu.memory_space<vmem>>, vector<16x128xf32>,
    return
  }
  func.func @transform_0(%arg0: i32, %arg1: i32) -> (i32, i32) {
    %c0_i32 = arith.constant 0 : i32
    %c0_i32_0 = arith.constant 0 : i32
    return %arg0, %c0_i32 : i32, i32
  }
  func.func @transform_1(%arg0: i32, %arg1: i32) -> (i32, i32) {
    %c0_i32 = arith.constant 0 : i32
    %c0_i32_0 = arith.constant 0 : i32
    return %c0_i32, %arg1 : i32, i32
  }
  func.func @transform_2(%arg0: i32, %arg1: i32) -> (i32, i32) {
    %c0_i32 = arith.constant 0 : i32
    %c0_i32_0 = arith.constant 0 : i32
    return %c0_i32, %arg1 : i32, i32
  }
  func.func @transform_3(%arg0: i32, %arg1: i32) -> (i32, i32) {
    %c0_i32 = arith.constant 0 : i32
    return %arg0, %arg1 : i32, i32
  }
}

</mosaic_0001>

<llo_original>
// kernel: tpu_custom_call.1
$region0: #{tpu_custom_call.1}
  #allocation0 [shape = 'u32[]', space=smem, size = 0x4, offset = 0x4, fixed_abs, tag = 'smem constant byte address 0x4 - core index']
  #allocation1 [shape = 'u32[72,128]{1,0:T(1,128)}', space=vmem, size = 0x9000, scoped, tag = 'internal scratch']
  %s0 = inlined_call_operand.hbm [shape: f32[16,32], index: 0, kind: input, shape index: {}]
  %s1 = inlined_call_operand.hbm [shape: f32[32,128], index: 1, kind: input, shape index: {}]
  %s2 = inlined_call_operand.vmem [shape: f32[1,128], index: 2, kind: input, shape index: {}]
  %s3 = inlined_call_operand.hbm [shape: f32[16,128], index: 3, kind: output, shape index: {}]
  %s4 = sld [smem:[#allocation0]]
  $region30: #{tpu_custom_call.1} parent=0
    _
  %s6 = ssub.s32 1, %s4
  %s7 = scalar_select 0, %s6, %s4
  $region1: #{tpu_custom_call.1} parent=0
    #allocation2 [shape = 'u8[8192]{0}', space=vmem, size = 0x2000, scoped, tag = 'input window, operand 0, single buffered']
    #allocation3 [shape = 's32[1]{0}', space=sflag, size = 0x4, scoped, tag = 'scoped memory for tpu_custom_call.1']
    #allocation4 [shape = 's32[1]{0}', space=sflag, size = 0x4, scoped, tag = 'scoped memory for tpu_custom_call.1']
    #allocation5 [shape = 'u8[16384]{0}', space=vmem, size = 0x4000, scoped, tag = 'input window, operand 1, single buffered']
    #allocation6 [shape = 's32[1]{0}', space=sflag, size = 0x4, scoped, tag = 'scoped memory for tpu_custom_call.1']
    #allocation7 [shape = 'u8[8192]{0}', space=vmem, size = 0x2000, scoped, tag = 'output window, operand 0, single buffered']
    %8 = vsyncpa [#allocation3], 0
    %9 = vsyncpa [#allocation6], 0
    %10 = vsyncpa [#allocation4], 0
    // Predicated region
    $region2: #{tpu_custom_call.1} parent=1 // pred_check
      _
    $region3: #{tpu_custom_call.1} parent=1 // pred_check_branch
      %12 = sbr.rel (0) target = $region5
    $region4: #{tpu_custom_call.1} parent=1 // pred_region
      %14 = vsyncadd [#allocation3], 0
      %s15 = sshll.u32 %s0, 4
      %s16 = int_to_ptr.hbm [resolvable:$true] %s15
      %s17 = sshll.u32 [#allocation2], 4
      %s18 = int_to_ptr.vmem [resolvable:$true] %s17
      %23 = dma.hbm_to_vmem [thread:$0]  %s16, 256, %s18, [#allocation3], 128, 128, 8
    $region5: #{tpu_custom_call.1} parent=1 // pred_fallthru
      _
    // Predicated region
    $region6: #{tpu_custom_call.1} parent=1 // pred_check
      _
    $region7: #{tpu_custom_call.1} parent=1 // pred_check_branch
      %25 = sbr.rel (0) target = $region9
    $region8: #{tpu_custom_call.1} parent=1 // pred_region
      %27 = vsyncadd [#allocation6], 0
      %s28 = sshll.u32 %s1, 4
      %s29 = int_to_ptr.hbm [resolvable:$true] %s28
      %s30 = sshll.u32 [#allocation5], 4
      %s31 = int_to_ptr.vmem [resolvable:$true] %s30
      %36 = dma.hbm_to_vmem [thread:$0]  %s29, 512, %s31, [#allocation6], 128, 128, 8
    $region9: #{tpu_custom_call.1} parent=1 // pred_fallthru
      _
    // Predicated region
    $region10: #{tpu_custom_call.1} parent=1 // pred_check
      _
    $region11: #{tpu_custom_call.1} parent=1 // pred_check_branch
      %38 = sbr.rel (0) target = $region13
    $region12: #{tpu_custom_call.1} parent=1 // pred_region
      _
    $region13: #{tpu_custom_call.1} parent=1 // pred_fallthru
      _
    // Predicated region
    $region14: #{tpu_custom_call.1} parent=1 // pred_check
      _
    $region15: #{tpu_custom_call.1} parent=1 // pred_check_branch
      %40 = sbr.rel (0) target = $region17
    $region16: #{tpu_custom_call.1} parent=1 // pred_region
      %42 = dma.done [#allocation3], 256
    $region17: #{tpu_custom_call.1} parent=1 // pred_fallthru
      _
    // Predicated region
    $region18: #{tpu_custom_call.1} parent=1 // pred_check
      _
    $region19: #{tpu_custom_call.1} parent=1 // pred_check_branch
      %44 = sbr.rel (0) target = $region21
    $region20: #{tpu_custom_call.1} parent=1 // pred_region
      %46 = dma.done [#allocation6], 512
    $region21: #{tpu_custom_call.1} parent=1 // pred_fallthru
      _
    %v47 = vld [vmem:[#allocation2] sm:$0xff]
    %v48 = vld [vmem:[#allocation2 + $0x8] sm:$0xff]
    %v49 = vld [vmem:[#allocation5] sm:$0xff]
    %v50 = vld [vmem:[#allocation5 + $0x8] sm:$0xff]
    %v51 = vld [vmem:[#allocation5 + $0x10] sm:$0xff]
    %v52 = vld [vmem:[#allocation5 + $0x18] sm:$0xff]
    %v53 = vld [vmem:[%s2] sm:$0x1]
    %v55 = vperm.slane %v53, 0
    %vm57 = vcmask 261120
    %v59 = vsel %vm57, %v47, 0
    %v62 = vsel %vm57, %v48, 0
    %64 = vmatpush.msra.mxu0 0.0
    %65 = vmatpush.msra.mxu0 0.0
    %66 = vmatpush.msra.mxu0 0.0
    %67 = vmatpush.msra.mxu0 0.0
    %68 = vmatpush.msra.mxu0 0.0
    %69 = vmatpush.msra.mxu0 0.0
    %70 = vmatpush.msra.mxu0 0.0
    %71 = vmatpush.msra.mxu0 0.0
    %72 = vmatpush.msra.mxu0 0.0
    %73 = vmatpush.msra.mxu0 0.0
    %74 = vmatpush.msra.mxu0 0.0
    %75 = vmatpush.msra.mxu0 0.0
    %76 = vmatpush.msra.mxu0 %v52
    %77 = vmatpush.msra.mxu0 %v51
    %78 = vmatpush.msra.mxu0 %v50
    %79 = vmatpush.msra.mxu0 %v49
    %80 = vmatmul.f32.gmra.mxu0 %v59
    %v81 = vpop.f32.mrf.mxu0
    %v82 = vadd.f32 %v55, %v81
    %83 = vmatmul.f32.gmra.mxu0 %v62
    %v84 = vpop.f32.mrf.mxu0
    %v85 = vadd.f32 %v55, %v84
    %86 = vdwg.mxu0
    %v87 = vmul.f32 %v82, 0.5
    %v88 = vmul.f32 %v85, 0.5
    %v89 = vmul.f32 %v82, 0.70710677
    %v90 = vmul.f32 %v85, 0.70710677
    %v91 = vand.u32 2147483647, %v89
    %v92 = vand.u32 2147483647, %v90
    %v93 = vmul.f32 %v91, 0.3275911
    %v94 = vmul.f32 %v92, 0.3275911
    %v95 = vadd.f32 %v93, 1.0
    %v96 = vadd.f32 %v94, 1.0
    %v97 = vrcp.pop %v95
    %v98 = vmul.f32 %v95, %v97
    %v99 = vsub.f32 1.0, %v98
    %v100 = vmul.f32 %v97, %v99
    %v101 = vadd.f32 %v97, %v100
    %vm102 = vweird.f32 %v95
    %vm103 = vweird.f32 %v97
    %vm104 = vmor %vm102, %vm103
    %v105 = vsel %vm104, %v97, %v101
    %v106 = vand.u32 2147483647, %v95
    %vm107 = vcmp.eq.f32.partialorder %v106, 8.507059e+37
    %v108 = vand.u32 %v95, 2147483648
    %v109 = vor.u32 1.1754944e-38, %v108
    %v110 = vsel %vm107, %v109, %v105
    %v111 = vrcp.pop %v96
    %v112 = vmul.f32 %v96, %v111
    %v113 = vsub.f32 1.0, %v112
    %v114 = vmul.f32 %v111, %v113
    %v115 = vadd.f32 %v111, %v114
    %vm116 = vweird.f32 %v96
    %vm117 = vweird.f32 %v111
    %vm118 = vmor %vm116, %vm117
    %v119 = vsel %vm118, %v111, %v115
    %v120 = vand.u32 2147483647, %v96
    %vm121 = vcmp.eq.f32.partialorder %v120, 8.507059e+37
    %v122 = vand.u32 %v96, 2147483648
    %v123 = vor.u32 1.1754944e-38, %v122
    %v124 = vsel %vm121, %v123, %v119
    %v125 = vmul.f32 %v110, 1.0614054
    %v126 = vmul.f32 %v124, 1.0614054
    %v127 = vadd.f32 %v125, -1.4531521
    %v128 = vadd.f32 %v126, -1.4531521
    %v129 = vmul.f32 %v127, %v110
    %v130 = vmul.f32 %v128, %v124
    %v131 = vadd.f32 %v129, 1.4214138
    %v132 = vadd.f32 %v130, 1.4214138
    %v133 = vmul.f32 %v131, %v110
    %v134 = vmul.f32 %v132, %v124
    %v135 = vadd.f32 %v133, -0.28449672
    %v136 = vadd.f32 %v134, -0.28449672
    %v137 = vmul.f32 %v135, %v110
    %v138 = vmul.f32 %v136, %v124
    %v139 = vadd.f32 %v137, 0.2548296
    %v140 = vadd.f32 %v138, 0.2548296
    %v141 = vmul.f32 %v139, %v110
    %v142 = vmul.f32 %v140, %v124
    %v143 = vsub.f32 0.0, %v91
    %v144 = vsub.f32 0.0, %v92
    %v145 = vmul.f32 %v143, %v91
    %v146 = vmul.f32 %v144, %v92
    %v147 = vmul.f32 %v145, 1.442695
    %v148 = vpow.pop %v147
    %v149 = vmul.f32 %v146, 1.442695
    %v150 = vpow.pop %v149
    %v151 = vmul.f32 %v141, %v148
    %v152 = vmul.f32 %v142, %v150
    %v153 = vsub.f32 1.0, %v151
    %v154 = vsub.f32 1.0, %v152
    %vm155 = vcmp.ge.f32.partialorder %v89, 0.0
    %vm156 = vcmp.ge.f32.partialorder %v90, 0.0
    %v157 = vsub.f32 0.0, %v153
    %v158 = vsub.f32 0.0, %v154
    %v159 = vsel %vm155, %v153, %v157
    %v160 = vsel %vm156, %v154, %v158
    %v161 = vadd.f32 %v159, 1.0
    %v162 = vadd.f32 %v160, 1.0
    %v163 = vmul.f32 %v87, %v161
    %v164 = vmul.f32 %v88, %v162
    %165 = vst [vmem:[#allocation7] sm:$0xff] %v163
    %166 = vst [vmem:[#allocation7 + $0x8] sm:$0xff] %v164
    // Predicated region
    $region22: #{tpu_custom_call.1} parent=1 // pred_check
      _
    $region23: #{tpu_custom_call.1} parent=1 // pred_check_branch
      %168 = sbr.rel (0) target = $region25
    $region24: #{tpu_custom_call.1} parent=1 // pred_region
      %170 = vsyncadd [#allocation4], 0
      %s171 = sshll.u32 [#allocation7], 4
      %s172 = int_to_ptr.vmem [resolvable:$true] %s171
      %s173 = sshll.u32 %s3, 4
      %s174 = int_to_ptr.hbm [resolvable:$true] %s173
      %179 = dma.vmem_to_hbm [thread:$0]  %s172, 256, %s174, [#allocation4], 128, 128, 8
    $region25: #{tpu_custom_call.1} parent=1 // pred_fallthru
      _
    // Predicated region
    $region26: #{tpu_custom_call.1} parent=1 // pred_check
      _
    $region27: #{tpu_custom_call.1} parent=1 // pred_check_branch
      %181 = sbr.rel (0) target = $region29
    $region28: #{tpu_custom_call.1} parent=1 // pred_region
      %183 = dma.done [#allocation4], 256
    $region29: #{tpu_custom_call.1} parent=1 // pred_fallthru
      _
    %184 = vsyncpa [#allocation3], 1
    %185 = vsyncpa [#allocation6], 1
    %186 = vsyncpa [#allocation4], 1

</llo_original>
